<compile_context>
chip_gen: v7x
topology: tpu7x:2x2x1
jax: 0.10.0
libtpu: 0.0.40
codegen_flags: <defaults>
</compile_context>

<pallas_src>
import functools

import jax
import jax.numpy as jnp
from jax.experimental import pallas as pl
from jax.experimental.pallas import tpu as pltpu


def _round_up(v, m):
    return ((v + m - 1) // m) * m


def _vmem_capacity_bytes():
    try:
        return int(pltpu.get_tpu_info().vmem_capacity_bytes)
    except Exception:
        return 64 * 1024 * 1024  # conservative default (v7x per-TensorCore)


def _pick_wk_tiles(in_dim, n_dend, compute_dtype):
    """Pick (tn, tk) tiles for the weight [in_dim, n_dend] given VMEM size."""
    vmem_cap = _vmem_capacity_bytes()
    big_vmem = vmem_cap >= 100 * 1024 * 1024          # v5e / v6e: 128 MiB
    is_16bit = jnp.dtype(compute_dtype).itemsize == 2

    # Output (lane) tile: lane-dense, capped so VMEM stays bounded; on 64 MiB
    # parts (v7x, 2 TC/chip) keep >=2 parallel steps when n_dend is large.
    tn_cap = 2048 if big_vmem else 1024
    if (not big_vmem) and n_dend >= 1024:
        tn_cap = 512
    tn = min(_round_up(n_dend, 128), tn_cap)

    # Contraction tile: single tile whenever it fits (no accumulator needed),
    # otherwise 128-aligned chunks.
    if big_vmem:
        tk_cap = 4096 if is_16bit else 2048
    else:
        tk_cap = 2048 if is_16bit else 1024
    tk = in_dim if in_dim <= tk_cap else tk_cap
    return tn, tk


# ----------------------------------------------------------------------------
# Kernels
# ----------------------------------------------------------------------------
def _dendrite_input_kernel_1k(x_ref, w_ref, b_ref, o_ref):
    # Single K tile: no scratch, no branches.  x:(tb,K) w:(K,tn) b:(1,tn).
    o_ref[...] = (
        jnp.dot(x_ref[...], w_ref[...], preferred_element_type=jnp.float32)
        + b_ref[...]
    ).astype(o_ref.dtype)


def _dendrite_input_kernel_acc(x_ref, w_ref, b_ref, o_ref, acc_ref):
    # Tiled K: f32 accumulator resident across the (innermost) k axis.
    k = pl.program_id(2)

    @pl.when(k == 0)
    def _():
        # Seed the accumulator with the bias -> epilogue is a pure cast/store.
        acc_ref[...] = jnp.broadcast_to(b_ref[...], acc_ref.shape).astype(
            jnp.float32
        )

    acc_ref[...] += jnp.dot(
        x_ref[...], w_ref[...], preferred_element_type=jnp.float32
    )

    @pl.when(k == pl.num_programs(2) - 1)
    def _():
        o_ref[...] = acc_ref[...].astype(o_ref.dtype)


# ----------------------------------------------------------------------------
# Parameter preparation (one-time: cast + pad W and bias)
# ----------------------------------------------------------------------------
def prepare_dendrite_input_params(w_t, b, *, compute_dtype=jnp.float32):
    """Cast/pad parameters once so the per-call path only streams them.

    w_t : [in_dim, n_dend]  (transposed, already sparsified weight)
    b   : [n_dend] or [1, n_dend]
    Returns (wc, bc, meta) where meta holds the static tiling kwargs for
    dendrite_input_forward.
    """
    in_dim, n_dend = w_t.shape
    tn, tk = _pick_wk_tiles(in_dim, n_dend, compute_dtype)
    Np = _round_up(n_dend, tn)
    Kp = in_dim if tk == in_dim else _round_up(in_dim, tk)

    wc = jnp.asarray(w_t).astype(compute_dtype)
    if Kp != in_dim or Np != n_dend:
        wc = jnp.pad(wc, ((0, Kp - in_dim), (0, Np - n_dend)))

    bc = jnp.asarray(b, jnp.float32).reshape(1, -1)
    if Np != n_dend:
        bc = jnp.pad(bc, ((0, 0), (0, Np - n_dend)))

    meta = dict(n_dend=n_dend, in_dim=in_dim, tn=tn, tk=tk)
    return wc, bc, meta


# ----------------------------------------------------------------------------
# Forward
# ----------------------------------------------------------------------------
@functools.partial(jax.jit, static_argnames=("n_dend", "in_dim", "tn", "tk"))
def dendrite_input_forward(x, wc, bc, *, n_dend, in_dim, tn, tk):
    """y = x @ w_t + b with pre-prepared (cast/padded) wc, bc.

    x  : [B, in_dim]   (float32; cast to wc.dtype per call -- x is small)
    wc : [Kp, Np]      compute-dtype weight, padded to tile multiples
    bc : [1, Np]       float32 bias, padded
    """
    B = x.shape[0]
    Kp, Np = wc.shape
    compute_dtype = wc.dtype
    out_dtype = x.dtype

    sublane = 16 if jnp.dtype(compute_dtype).itemsize == 2 else 8
    tb = min(_round_up(B, sublane), 512)
    Bp = _round_up(B, tb)
    # TODO(synk): for training / large-batch (Bp//tb > 1) with a tiled K axis,
    # W is re-streamed once per batch tile; keep W resident across the batch
    # sweep (two-level emit_pipeline) if that regime matters.

    xc = x.astype(compute_dtype)
    if Bp != B or Kp != in_dim:
        xc = jnp.pad(xc, ((0, Bp - B), (0, Kp - in_dim)))

    single_k = (Kp == tk)

    # VMEM budget: double-buffered inputs/bias/output (+ accumulator), with
    # headroom and capped at ~75% of physical VMEM (48 MiB on v7x).
    in_bytes = jnp.dtype(compute_dtype).itemsize
    out_bytes = jnp.dtype(out_dtype).itemsize
    vmem_needed = 2 * (
        tb * tk * in_bytes + tk * tn * in_bytes + tn * 4 + tb * tn * out_bytes
    )
    if not single_k:
        vmem_needed += tb * tn * 4
    vmem_cap = _vmem_capacity_bytes()
    vmem_limit = max(
        32 * 1024 * 1024,
        min(int(0.75 * vmem_cap), int(vmem_needed * 3 // 2)),
    )

    if single_k:
        grid = (Np // tn, Bp // tb)  # (j: out tiles, i: batch tiles)
        out = pl.pallas_call(
            _dendrite_input_kernel_1k,
            out_shape=jax.ShapeDtypeStruct((Bp, Np), out_dtype),
            grid_spec=pltpu.PrefetchScalarGridSpec(
                num_scalar_prefetch=0,
                grid=grid,
                in_specs=[
                    pl.BlockSpec((tb, tk), lambda j, i: (i, 0)),  # x
                    pl.BlockSpec((tk, tn), lambda j, i: (0, j)),  # W (resident
                                                                  #  across i)
                    pl.BlockSpec((1, tn), lambda j, i: (0, j)),   # bias
                ],
                out_specs=pl.BlockSpec((tb, tn), lambda j, i: (i, j)),
            ),
            compiler_params=pltpu.CompilerParams(
                dimension_semantics=("parallel", "parallel"),
                vmem_limit_bytes=vmem_limit,
            ),
        )(xc, wc, bc)
    else:
        grid = (Np // tn, Bp // tb, Kp // tk)  # k innermost (reduction)
        out = pl.pallas_call(
            _dendrite_input_kernel_acc,
            out_shape=jax.ShapeDtypeStruct((Bp, Np), out_dtype),
            grid_spec=pltpu.PrefetchScalarGridSpec(
                num_scalar_prefetch=0,
                grid=grid,
                in_specs=[
                    pl.BlockSpec((tb, tk), lambda j, i, k: (i, k)),  # x
                    pl.BlockSpec((tk, tn), lambda j, i, k: (k, j)),  # W
                    pl.BlockSpec((1, tn), lambda j, i, k: (0, j)),   # bias
                ],
                out_specs=pl.BlockSpec((tb, tn), lambda j, i, k: (i, j)),
                scratch_shapes=[pltpu.VMEM((tb, tn), jnp.float32)],
            ),
            compiler_params=pltpu.CompilerParams(
                dimension_semantics=("parallel", "parallel", "arbitrary"),
                vmem_limit_bytes=vmem_limit,
            ),
        )(xc, wc, bc)

    if Bp != B or Np != n_dend:
        out = out[:B, :n_dend]
    return out


# ----------------------------------------------------------------------------
# Parameter construction mirroring nn.Linear init + SparseWeights mask
# ----------------------------------------------------------------------------
def init_dendrite_input_params(key, in_dim, n_dendrites, weight_sparsity=0.2):
    """nn.Linear-style uniform init, then keep ~weight_sparsity fraction of
    inputs nonzero per output unit (fixed mask, as in SparseWeights)."""
    k_w, k_b, k_mask = jax.random.split(key, 3)
    bound = 1.0 / jnp.sqrt(jnp.float32(in_dim))
    weight = jax.random.uniform(
        k_w, (n_dendrites, in_dim), jnp.float32, minval=-bound, maxval=bound
    )
    bias = jax.random.uniform(
        k_b, (n_dendrites,), jnp.float32, minval=-bound, maxval=bound
    )
    n_keep = max(1, int(round(weight_sparsity * in_dim)))
    scores = jax.random.uniform(k_mask, (n_dendrites, in_dim))
    keep_idx = jnp.argsort(scores, axis=1)[:, :n_keep]
    mask = jnp.zeros((n_dendrites, in_dim), jnp.float32)
    mask = mask.at[jnp.arange(n_dendrites)[:, None], keep_idx].set(1.0)
    weight = weight * mask
    w_t = weight.T          # [in_dim, n_dendrites]
    b = bias[None, :]       # [1, n_dendrites]
    return w_t, b


if __name__ == "__main__":
    key = jax.random.PRNGKey(0)
    k_x, k_p, k_x2, k_p2 = jax.random.split(key, 4)

    # --- Module-consistent small shapes: in_dim=32, n_dendrites=128, B=8 ----
    B, IN_DIM, N_DEND = 8, 32, 128
    x = jax.random.normal(k_x, (B, IN_DIM), jnp.float32)
    w_t, b = init_dendrite_input_params(k_p, IN_DIM, N_DEND, 0.2)
    ref = x @ w_t + b

    # Default (float32) path: exact parity with the nn.Linear reference.
    wc, bc, meta = prepare_dendrite_input_params(w_t, b)
    out_f32 = jax.block_until_ready(dendrite_input_forward(x, wc, bc, **meta))
    assert out_f32.shape == (B, N_DEND)
    assert jnp.allclose(out_f32, ref, atol=1e-5, rtol=1e-5)

    # Optional bf16 fast path (W halved in HBM/VMEM, f32 accumulate).
    wc16, bc16, meta16 = prepare_dendrite_input_params(
        w_t, b, compute_dtype=jnp.bfloat16
    )
    out_bf16 = jax.block_until_ready(
        dendrite_input_forward(x, wc16, bc16, **meta16)
    )
    assert out_bf16.shape == (B, N_DEND)
    assert jnp.allclose(out_bf16, ref, atol=5e-2, rtol=5e-2)

    # --- Exercise the tiled-K accumulator path deterministically ------------
    B2, IN_DIM2, N_DEND2 = 16, 256, 256
    x2 = jax.random.normal(k_x2, (B2, IN_DIM2), jnp.float32)
    w_t2, b2 = init_dendrite_input_params(k_p2, IN_DIM2, N_DEND2, 0.2)
    wc2, bc2, meta2 = prepare_dendrite_input_params(w_t2, b2)
    meta2 = dict(meta2, tk=128)  # force Kp//tk = 2 (accumulator kernel)
    wc2 = wc2  # already padded to a multiple of 128 in K? (256 is)
    out2 = jax.block_until_ready(dendrite_input_forward(x2, wc2, bc2, **meta2))
    ref2 = x2 @ w_t2 + b2
    assert out2.shape == (B2, N_DEND2)
    assert jnp.allclose(out2, ref2, atol=1e-4, rtol=1e-4)

    print("KERNEL_OK")
</pallas_src>

<mosaic_0001>
module attributes {stable_mosaic.version = 11 : i64} {
  func.func @_dendrite_input_kernel_1k(%arg0: i32, %arg1: i32, %arg2: memref<8x32xf32, #tpu.memory_space<vmem>>, %arg3: memref<32x128xf32, #tpu.memory_space<vmem>>, %arg4: memref<1x128xf32, #tpu.memory_space<vmem>>, %arg5: memref<8x128xf32, #tpu.memory_space<vmem>>) attributes {dimension_semantics = [#tpu.dimension_semantics<parallel>, #tpu.dimension_semantics<parallel>], iteration_bounds = array<i64: 1, 1>, scalar_prefetch = 0 : i64, scratch_operands = 0 : i64, tpu.core_type = #tpu.core_type<tc>, window_params = [{transform_indices = @transform_0, window_bounds = array<i64: 8, 32>}, {transform_indices = @transform_1, window_bounds = array<i64: 32, 128>}, {transform_indices = @transform_2, window_bounds = array<i64: 1, 128>}, {transform_indices = @transform_3, window_bounds = array<i64: 8, 128>}]} {
    %c0 = arith.constant 0 : index
    %c0_0 = arith.constant 0 : index
    %0 = vector.load %arg2[%c0, %c0_0] : memref<8x32xf32, #tpu.memory_space<vmem>>, vector<8x32xf32>
    %c0_1 = arith.constant 0 : index
    %c0_2 = arith.constant 0 : index
    %1 = vector.load %arg3[%c0_1, %c0_2] : memref<32x128xf32, #tpu.memory_space<vmem>>, vector<32x128xf32>
    %cst = arith.constant dense<0.000000e+00> : vector<8x128xf32>
    %2 = tpu.matmul %0, %1, %cst {dimension_numbers = #tpu.dot_dimension_numbers<[1], [0], [0], [1], [0, 0, 1, 1], [], []>} : vector<8x32xf32>, vector<32x128xf32>, vector<8x128xf32> -> vector<8x128xf32>
    %c0_3 = arith.constant 0 : index
    %c0_4 = arith.constant 0 : index
    %3 = vector.load %arg4[%c0_3, %c0_4] : memref<1x128xf32, #tpu.memory_space<vmem>>, vector<1x128xf32>
    %4 = vector.broadcast %3 : vector<1x128xf32> to vector<8x128xf32>
    %5 = arith.addf %2, %4 : vector<8x128xf32>
    %c0_5 = arith.constant 0 : index
    %c0_6 = arith.constant 0 : index
    %6 = vector.load %arg5[%c0_5, %c0_6] : memref<8x128xf32, #tpu.memory_space<vmem>>, vector<8x128xf32>
    tpu.vector_store %arg5[%c0_5, %c0_6], %5 {strides = array<i32>} : memref<8x128xf32, #tpu.memory_space<vmem>>, vector<8x128xf32>,
    return
  }
  func.func @transform_0(%arg0: i32, %arg1: i32) -> (i32, i32) {
    %c0_i32 = arith.constant 0 : i32
    %c0_i32_0 = arith.constant 0 : i32
    return %arg1, %c0_i32 : i32, i32
  }
  func.func @transform_1(%arg0: i32, %arg1: i32) -> (i32, i32) {
    %c0_i32 = arith.constant 0 : i32
    %c0_i32_0 = arith.constant 0 : i32
    return %c0_i32, %arg0 : i32, i32
  }
  func.func @transform_2(%arg0: i32, %arg1: i32) -> (i32, i32) {
    %c0_i32 = arith.constant 0 : i32
    %c0_i32_0 = arith.constant 0 : i32
    return %c0_i32, %arg0 : i32, i32
  }
  func.func @transform_3(%arg0: i32, %arg1: i32) -> (i32, i32) {
    %c0_i32 = arith.constant 0 : i32
    return %arg1, %arg0 : i32, i32
  }
}

</mosaic_0001>

<llo_original>
// kernel: dendrite_input_forward.1
$region0: #{dendrite_input_forward.1}
  #allocation0 [shape = 'u32[]', space=smem, size = 0x4, offset = 0x4, fixed_abs, tag = 'smem constant byte address 0x4 - core index']
  #allocation1 [shape = 'u32[144,128]{1,0:T(1,128)}', space=vmem, size = 0x12000, scoped, tag = 'internal scratch']
  %s0 = inlined_call_operand.hbm [shape: f32[8,32], index: 0, kind: input, shape index: {}]
  %s1 = inlined_call_operand.hbm [shape: f32[32,128], index: 1, kind: input, shape index: {}]
  %s2 = inlined_call_operand.vmem [shape: f32[1,128], index: 2, kind: input, shape index: {}]
  %s3 = inlined_call_operand.hbm [shape: f32[8,128], index: 3, kind: output, shape index: {}]
  %s4 = sld [smem:[#allocation0]]
  $region30: #{dendrite_input_forward.1} parent=0
    _
  %s6 = ssub.s32 1, %s4
  %s7 = scalar_select 0, %s6, %s4
  $region1: #{dendrite_input_forward.1} parent=0
    #allocation2 [shape = 'u8[4096]{0}', space=vmem, size = 0x1000, scoped, tag = 'input window, operand 0, single buffered']
    #allocation3 [shape = 's32[1]{0}', space=sflag, size = 0x4, scoped, tag = 'scoped memory for dendrite_input_forward.1']
    #allocation4 [shape = 's32[1]{0}', space=sflag, size = 0x4, scoped, tag = 'scoped memory for dendrite_input_forward.1']
    #allocation5 [shape = 'u8[16384]{0}', space=vmem, size = 0x4000, scoped, tag = 'input window, operand 1, single buffered']
    #allocation6 [shape = 's32[1]{0}', space=sflag, size = 0x4, scoped, tag = 'scoped memory for dendrite_input_forward.1']
    #allocation7 [shape = 'u8[4096]{0}', space=vmem, size = 0x1000, scoped, tag = 'output window, operand 0, single buffered']
    %8 = vsyncpa [#allocation3], 0
    %9 = vsyncpa [#allocation6], 0
    %10 = vsyncpa [#allocation4], 0
    // Predicated region
    $region2: #{dendrite_input_forward.1} parent=1 // pred_check
      _
    $region3: #{dendrite_input_forward.1} parent=1 // pred_check_branch
      %12 = sbr.rel (0) target = $region5
    $region4: #{dendrite_input_forward.1} parent=1 // pred_region
      %s14 = ssub.s32 128, 128
      %15 = vsyncadd [#allocation3], %s14
      %s17 = sshll.u32 [#allocation2], 4
      %s18 = int_to_ptr.vmem [resolvable:$true] %s17
      %20 = dma.hbm_to_vmem [thread:$0]  %s0, 128, %s18, [#allocation3]
    $region5: #{dendrite_input_forward.1} parent=1 // pred_fallthru
      _
    // Predicated region
    $region6: #{dendrite_input_forward.1} parent=1 // pred_check
      _
    $region7: #{dendrite_input_forward.1} parent=1 // pred_check_branch
      %22 = sbr.rel (0) target = $region9
    $region8: #{dendrite_input_forward.1} parent=1 // pred_region
      %s24 = ssub.s32 512, 512
      %25 = vsyncadd [#allocation6], %s24
      %s26 = sshll.u32 [#allocation5], 4
      %s27 = int_to_ptr.vmem [resolvable:$true] %s26
      %32 = dma.hbm_to_vmem [thread:$0]  %s1, 512, %s27, [#allocation6], 128, 128, 8
    $region9: #{dendrite_input_forward.1} parent=1 // pred_fallthru
      _
    // Predicated region
    $region10: #{dendrite_input_forward.1} parent=1 // pred_check
      _
    $region11: #{dendrite_input_forward.1} parent=1 // pred_check_branch
      %34 = sbr.rel (0) target = $region13
    $region12: #{dendrite_input_forward.1} parent=1 // pred_region
      _
    $region13: #{dendrite_input_forward.1} parent=1 // pred_fallthru
      _
    // Predicated region
    $region14: #{dendrite_input_forward.1} parent=1 // pred_check
      _
    $region15: #{dendrite_input_forward.1} parent=1 // pred_check_branch
      %36 = sbr.rel (0) target = $region17
    $region16: #{dendrite_input_forward.1} parent=1 // pred_region
      %37 = dma.done [#allocation3], 128
    $region17: #{dendrite_input_forward.1} parent=1 // pred_fallthru
      _
    // Predicated region
    $region18: #{dendrite_input_forward.1} parent=1 // pred_check
      _
    $region19: #{dendrite_input_forward.1} parent=1 // pred_check_branch
      %39 = sbr.rel (0) target = $region21
    $region20: #{dendrite_input_forward.1} parent=1 // pred_region
      %40 = dma.done [#allocation6], 512
    $region21: #{dendrite_input_forward.1} parent=1 // pred_fallthru
      _
    %v41 = vld [vmem:[#allocation2] sm:$0xff]
    %v42 = vld [vmem:[#allocation5] sm:$0xff]
    %v43 = vld [vmem:[#allocation5 + $0x8] sm:$0xff]
    %v44 = vld [vmem:[#allocation5 + $0x10] sm:$0xff]
    %v45 = vld [vmem:[#allocation5 + $0x18] sm:$0xff]
    %v46 = vld [vmem:[%s2] sm:$0x1]
    %v48 = vlaneseq
    %v49 = vshrl.u32 %v48, 7
    %v50 = vsub.s32 0, %v49
    %v51 = vrot.slane %v46, %v50
    %vm53 = vcmask 261120
    %v55 = vsel %vm53, %v41, 0
    %57 = vmatprep.subr.mxu0 0.0
    %58 = vmatpush1.msra.mxu0 %v42
    %59 = vmatprep.subr.mxu0 0.0
    %60 = vmatpush1.msra.mxu0 %v43
    %61 = vmatprep.subr.mxu0 0.0
    %62 = vmatpush1.msra.mxu0 %v44
    %63 = vmatprep.subr.mxu0 0.0
    %64 = vmatpush1.msra.mxu0 %v45
    %65 = vmatprep.subr.mxu0 0.0
    %66 = vmatpush1.msra.mxu0 0.0
    %67 = vmatprep.subr.mxu0 0.0
    %68 = vmatpush1.msra.mxu0 0.0
    %69 = vmatprep.subr.mxu0 0.0
    %70 = vmatpush1.msra.mxu0 0.0
    %71 = vmatprep.subr.mxu0 0.0
    %72 = vmatpush1.msra.mxu0 0.0
    %73 = vmatprep.subr.mxu0 0.0
    %74 = vmatpush1.msra.mxu0 0.0
    %75 = vmatprep.subr.mxu0 0.0
    %76 = vmatpush1.msra.mxu0 0.0
    %77 = vmatprep.subr.mxu0 0.0
    %78 = vmatpush1.msra.mxu0 0.0
    %79 = vmatprep.subr.mxu0 0.0
    %80 = vmatpush1.msra.mxu0 0.0
    %81 = vmatprep.subr.mxu0 0.0
    %82 = vmatpush1.msra.mxu0 0.0
    %83 = vmatprep.subr.mxu0 0.0
    %84 = vmatpush1.msra.mxu0 0.0
    %85 = vmatprep.subr.mxu0 0.0
    %86 = vmatpush1.msra.mxu0 0.0
    %87 = vmatprep.subr.mxu0 0.0
    %88 = vmatpush1.msra.mxu0 0.0
    %89 = vmatprep.subr.mxu0 0.0
    %90 = vmatpush1.msra.mxu0 0.0
    %91 = vmatprep.subr.mxu0 0.0
    %92 = vmatpush1.msra.mxu0 0.0
    %93 = vmatprep.subr.mxu0 0.0
    %94 = vmatpush1.msra.mxu0 0.0
    %95 = vmatprep.subr.mxu0 0.0
    %96 = vmatpush1.msra.mxu0 0.0
    %97 = vmatprep.subr.mxu0 0.0
    %98 = vmatpush1.msra.mxu0 0.0
    %99 = vmatprep.subr.mxu0 0.0
    %100 = vmatpush1.msra.mxu0 0.0
    %101 = vmatprep.subr.mxu0 0.0
    %102 = vmatpush1.msra.mxu0 0.0
    %103 = vmatprep.subr.mxu0 0.0
    %104 = vmatpush1.msra.mxu0 0.0
    %105 = vmatprep.subr.mxu0 0.0
    %106 = vmatpush1.msra.mxu0 0.0
    %107 = vmatprep.subr.mxu0 0.0
    %108 = vmatpush1.msra.mxu0 0.0
    %109 = vmatprep.subr.mxu0 0.0
    %110 = vmatpush1.msra.mxu0 0.0
    %111 = vmatprep.subr.mxu0 0.0
    %112 = vmatpush1.msra.mxu0 0.0
    %113 = vmatprep.subr.mxu0 0.0
    %114 = vmatpush1.msra.mxu0 0.0
    %115 = vmatprep.subr.mxu0 0.0
    %116 = vmatpush1.msra.mxu0 0.0
    %117 = vmatprep.subr.mxu0 0.0
    %118 = vmatpush1.msra.mxu0 0.0
    %119 = vmatprep.subr.mxu0 0.0
    %120 = vmatpush1.msra.mxu0 0.0
    %121 = vmatprep.mubr.f32.mxu0 0.0
    %122 = vmatmul.mubr.f32.gmra.mrb[0].mxu0 %v55
    %v123 = vpop.f32.mrb[0].mxu0
    %v124 = vadd.f32 %v51, %v123
    %v125 = vpop.f32.mrb[0].mxu0
    %126 = vdwg.mxu0
    %127 = vst [vmem:[#allocation7] sm:$0xff] %v124
    // Predicated region
    $region22: #{dendrite_input_forward.1} parent=1 // pred_check
      _
    $region23: #{dendrite_input_forward.1} parent=1 // pred_check_branch
      %129 = sbr.rel (0) target = $region25
    $region24: #{dendrite_input_forward.1} parent=1 // pred_region
      %s131 = ssub.s32 128, 128
      %132 = vsyncadd [#allocation4], %s131
      %s134 = sshll.u32 [#allocation7], 4
      %s135 = int_to_ptr.vmem [resolvable:$true] %s134
      %137 = dma.vmem_to_hbm [thread:$0]  %s135, 128, %s3, [#allocation4]
    $region25: #{dendrite_input_forward.1} parent=1 // pred_fallthru
      _
    // Predicated region
    $region26: #{dendrite_input_forward.1} parent=1 // pred_check
      _
    $region27: #{dendrite_input_forward.1} parent=1 // pred_check_branch
      %139 = sbr.rel (0) target = $region29
    $region28: #{dendrite_input_forward.1} parent=1 // pred_region
      %140 = dma.done [#allocation4], 128
    $region29: #{dendrite_input_forward.1} parent=1 // pred_fallthru
      _
    %141 = vsyncpa [#allocation3], 1
    %142 = vsyncpa [#allocation6], 1
    %143 = vsyncpa [#allocation4], 1

</llo_original>
